<compile_context>
chip_gen: v7x
topology: tpu7x:2x2x1
jax: 0.10.0
libtpu: 0.0.40
codegen_flags: <defaults>
</compile_context>

<pallas_src>
import jax
import jax.numpy as jnp
from jax.experimental import pallas as pl
from jax.experimental.pallas import tpu as pltpu


def _round_down(x: int, m: int) -> int:
    return (x // m) * m


def _vmem_budget_bytes() -> int:
    """Per-generation VMEM budget (~85% of capacity), conservative fallback."""
    try:
        cap = int(pltpu.get_tpu_info().vmem_capacity_bytes)
    except Exception:  # older jax / info unavailable: assume smallest (v7x, 64 MiB)
        cap = 64 * 1024 * 1024
    return max(32 * 1024 * 1024, int(cap * 0.85))


def _fit_tiles(tr, tc, nrows, ncols, footprint, budget):
    """Clamp/align (row, col) tiles to the array and shrink until they fit VMEM.

    Row tiles are multiples of 8 (sublane) or the full dim; column tiles are
    multiples of 128 (lane-dense) or the full dim — never larger than the array.
    """
    tr = nrows if nrows <= 8 else max(8, _round_down(min(tr, nrows), 8))
    tc = ncols if ncols <= 128 else max(128, _round_down(min(tc, ncols), 128))
    while footprint(tr, tc) > budget:
        if tc > 128:
            tc = max(128, _round_down(tc // 2, 128))
        elif tr > 8:
            tr = max(8, _round_down(tr // 2, 8))
        else:
            break
    return tr, tc


# ---------------------------------------------------------------------------
# Kernel 1: latent_x = x @ W_emb^T + b_emb      (tiled over N and H)
# ---------------------------------------------------------------------------
def _latent_x_kernel(x_ref, we_ref, be_ref, out_ref):
    lx = jnp.dot(x_ref[...], we_ref[...], preferred_element_type=jnp.float32)
    out_ref[...] = (lx + be_ref[...]).astype(out_ref.dtype)


def _project_x(x_c, w_emb_t_c, b_emb_row, tn, cdt, budget):
    n, e = x_c.shape
    h = w_emb_t_c.shape[1]
    csz = jnp.dtype(cdt).itemsize
    fp = lambda tr, tc: 2 * (tr * e * csz + e * tc * csz + tc * 4 + tr * tc * csz)
    tn, th = _fit_tiles(tn, 512, n, h, fp, budget)
    return pl.pallas_call(
        _latent_x_kernel,
        out_shape=jax.ShapeDtypeStruct((n, h), cdt),
        grid_spec=pltpu.PrefetchScalarGridSpec(
            num_scalar_prefetch=0,
            grid=(pl.cdiv(n, tn), pl.cdiv(h, th)),
            in_specs=[
                pl.BlockSpec((tn, e), lambda i, j: (i, 0)),   # x row block
                pl.BlockSpec((e, th), lambda i, j: (0, j)),   # W_emb^T col block
                pl.BlockSpec((1, th), lambda i, j: (0, j)),   # b_emb col block
            ],
            out_specs=pl.BlockSpec((tn, th), lambda i, j: (i, j)),
        ),
        compiler_params=pltpu.CompilerParams(
            dimension_semantics=("parallel", "parallel"),
            vmem_limit_bytes=budget),
    )(x_c, w_emb_t_c, b_emb_row)


# ---------------------------------------------------------------------------
# Kernel 2: latent_choices^T = W_basis @ basis^T + b_basis[:, None]  -> [H, V]
#           (pre-transposed so the main GEMM needs no per-tile relayout)
# ---------------------------------------------------------------------------
def _latent_choices_t_kernel(wb_ref, bt_ref, bb_ref, out_ref):
    lc = jnp.dot(wb_ref[...], bt_ref[...], preferred_element_type=jnp.float32)
    out_ref[...] = (lc + bb_ref[...]).astype(out_ref.dtype)


def _project_basis_t(w_basis_c, basis_t_c, b_basis_col, tv, cdt, budget):
    h, bd = w_basis_c.shape
    v = basis_t_c.shape[1]
    csz = jnp.dtype(cdt).itemsize
    fp = lambda tr, tc: 2 * (tr * bd * csz + bd * tc * csz + tr * 4 + tr * tc * csz)
    th, tv = _fit_tiles(512, tv, h, v, fp, budget)
    return pl.pallas_call(
        _latent_choices_t_kernel,
        out_shape=jax.ShapeDtypeStruct((h, v), cdt),
        grid_spec=pltpu.PrefetchScalarGridSpec(
            num_scalar_prefetch=0,
            grid=(pl.cdiv(h, th), pl.cdiv(v, tv)),
            in_specs=[
                pl.BlockSpec((th, bd), lambda i, j: (i, 0)),  # W_basis row block
                pl.BlockSpec((bd, tv), lambda i, j: (0, j)),  # basis^T col block
                pl.BlockSpec((th, 1), lambda i, j: (i, 0)),   # b_basis row block
            ],
            out_specs=pl.BlockSpec((th, tv), lambda i, j: (i, j)),
        ),
        compiler_params=pltpu.CompilerParams(
            dimension_semantics=("parallel", "parallel"),
            vmem_limit_bytes=budget),
    )(w_basis_c, basis_t_c, b_basis_col)


# ---------------------------------------------------------------------------
# Kernel 3: logits tile = latent_x @ latent_choices^T   (+ optional mask)
# ---------------------------------------------------------------------------
def _logits_kernel(lx_ref, lct_ref, out_ref):
    out_ref[...] = jnp.dot(lx_ref[...], lct_ref[...],
                           preferred_element_type=jnp.float32
                           ).astype(out_ref.dtype)


def _logits_masked_kernel(lx_ref, lct_ref, mask_ref, out_ref):
    logits = jnp.dot(lx_ref[...], lct_ref[...],
                     preferred_element_type=jnp.float32)
    # Select (not additive -inf bias): exact parity with torch's
    # `logits[:, mask] = -inf`, even when a logit is +inf or NaN.
    logits = jnp.where(mask_ref[...] != 0.0, -jnp.inf, logits)
    out_ref[...] = logits.astype(out_ref.dtype)


def classifier_probe(x, w_emb, b_emb, basis, w_basis, b_basis,
                     heldout_mask, holdout_eval_tokens,
                     *, tn: int = 512, tv: int = 1024,
                     compute_dtype=jnp.bfloat16, out_dtype=jnp.float32):
    """Pallas implementation of ClassifierProbe.forward.

    Args:
      x:            [N, emb_dim]
      w_emb:        [hidden_dim, emb_dim]    (torch nn.Linear weight layout)
      b_emb:        [hidden_dim]
      basis:        [num_tokens, basis_dim]
      w_basis:      [hidden_dim, basis_dim]  (torch nn.Linear weight layout)
      b_basis:      [hidden_dim]
      heldout_mask: [num_tokens] bool
      holdout_eval_tokens: static Python bool
      tn, tv:       requested logits tile sizes over N (rows) and V (tokens);
                    clamped to the problem and a per-generation VMEM budget.
      compute_dtype: MXU operand dtype (accumulation is always f32)
      out_dtype:    logits dtype (f32 for exact parity; bf16 halves the N*V
                    store stream on bandwidth-limited parts such as v5e)
    Returns:
      logits: [N, num_tokens] in out_dtype
    """
    n, e = x.shape
    v, bd = basis.shape
    h = w_emb.shape[0]
    assert w_emb.shape == (h, e) and w_basis.shape == (h, bd)
    assert b_emb.shape == (h,) and b_basis.shape == (h,)
    assert heldout_mask.shape == (v,)
    apply_mask = bool(holdout_eval_tokens)

    cdt = compute_dtype
    csz = jnp.dtype(cdt).itemsize
    osz = jnp.dtype(out_dtype).itemsize
    budget = _vmem_budget_bytes()

    # Main-GEMM tiles sized against the VMEM budget (double-buffered
    # lx / lct / out streams + the optional mask row).
    def main_fp(tr, tc):
        use = 2 * (tr * h * csz + h * tc * csz + tr * tc * osz)
        if apply_mask:
            use += 2 * tc * 4
        return use

    tn, tv = _fit_tiles(tn, tv, n, v, main_fp, budget)

    # One-time layout prep (tiny XLA ops outside the kernels).
    x_c = x.astype(cdt)
    w_emb_t_c = w_emb.T.astype(cdt)                      # [E, H]
    w_basis_c = w_basis.astype(cdt)                      # [H, B]
    basis_t_c = basis.T.astype(cdt)                      # [B, V]
    b_emb_row = b_emb.reshape(1, h).astype(jnp.float32)
    b_basis_col = b_basis.reshape(h, 1).astype(jnp.float32)

    # Hoisted projections (each computed exactly once, stored in compute dtype).
    latent_x = _project_x(x_c, w_emb_t_c, b_emb_row, tn, cdt, budget)          # [N, H]
    latent_choices_t = _project_basis_t(w_basis_c, basis_t_c, b_basis_col,
                                        tv, cdt, budget)                       # [H, V]

    grid = (pl.cdiv(n, tn), pl.cdiv(v, tv))
    in_specs = [
        pl.BlockSpec((tn, h), lambda i, j: (i, 0)),      # latent_x row block
        pl.BlockSpec((h, tv), lambda i, j: (0, j)),      # latent_choices^T col block
    ]
    args = [latent_x, latent_choices_t]
    if apply_mask:
        mask_f = heldout_mask.reshape(1, v).astype(jnp.float32)
        in_specs.append(pl.BlockSpec((1, tv), lambda i, j: (0, j)))
        args.append(mask_f)
        kernel = _logits_masked_kernel
    else:
        kernel = _logits_kernel            # no mask DMA / VMEM on the common path

    cost = pl.CostEstimate(
        flops=2 * n * h * v,
        transcendentals=0,
        bytes_accessed=(n * h * csz * grid[1] + h * v * csz * grid[0]
                        + n * v * osz + (v * 4 * grid[0] if apply_mask else 0)))

    return pl.pallas_call(
        kernel,
        out_shape=jax.ShapeDtypeStruct((n, v), out_dtype),
        grid_spec=pltpu.PrefetchScalarGridSpec(
            num_scalar_prefetch=0,
            grid=grid,
            in_specs=in_specs,
            out_specs=pl.BlockSpec((tn, tv), lambda i, j: (i, j)),
        ),
        compiler_params=pltpu.CompilerParams(
            dimension_semantics=("parallel", "parallel"),
            vmem_limit_bytes=budget),
        cost_estimate=cost,
    )(*args)


# ---------------------------------------------------------------------------
# References for testing
# ---------------------------------------------------------------------------
def _reference_f32(x, w_emb, b_emb, basis, w_basis, b_basis, mask, holdout):
    latent_x = x @ w_emb.T + b_emb
    latent_choices = basis @ w_basis.T + b_basis
    logits = latent_x @ latent_choices.T
    if holdout:
        logits = jnp.where(mask[None, :], -jnp.inf, logits)
    return logits


def _reference_mixed(x, w_emb, b_emb, basis, w_basis, b_basis, mask, holdout, cdt):
    # Mirrors the kernel's precision / layout choices (bf16 MXU, f32 accum).
    lx = jnp.dot(x.astype(cdt), w_emb.T.astype(cdt),
                 preferred_element_type=jnp.float32) + b_emb
    lx = lx.astype(cdt)
    lct = jnp.dot(w_basis.astype(cdt), basis.T.astype(cdt),
                  preferred_element_type=jnp.float32) + b_basis[:, None]
    lct = lct.astype(cdt)
    logits = jnp.dot(lx, lct, preferred_element_type=jnp.float32)
    if holdout:
        logits = jnp.where(mask[None, :], -jnp.inf, logits)
    return logits


if __name__ == "__main__":
    batch = 10
    emb_dim = 32
    hidden_dim = 64
    basis_dim = 16
    num_tokens = 300

    key = jax.random.PRNGKey(0)
    k_x, k_b, k_we, k_be, k_wb, k_bb, k_m = jax.random.split(key, 7)

    x = jax.random.normal(k_x, (batch, emb_dim), dtype=jnp.float32)
    basis = jax.random.normal(k_b, (num_tokens, basis_dim), dtype=jnp.float32)

    # Deterministic parameter init (Linear-style uniform bounds, torch layout).
    lim_e = 1.0 / (emb_dim ** 0.5)
    lim_b = 1.0 / (basis_dim ** 0.5)
    w_emb = jax.random.uniform(k_we, (hidden_dim, emb_dim),
                               minval=-lim_e, maxval=lim_e, dtype=jnp.float32)
    b_emb = jax.random.uniform(k_be, (hidden_dim,),
                               minval=-lim_e, maxval=lim_e, dtype=jnp.float32)
    w_basis = jax.random.uniform(k_wb, (hidden_dim, basis_dim),
                                 minval=-lim_b, maxval=lim_b, dtype=jnp.float32)
    b_basis = jax.random.uniform(k_bb, (hidden_dim,),
                                 minval=-lim_b, maxval=lim_b, dtype=jnp.float32)
    heldout_mask = jax.random.bernoulli(k_m, p=0.25, shape=(num_tokens,))

    cdt = jnp.bfloat16
    # (8, 128): multi-tile grid with partial edge blocks in both N and V.
    # (512, 1024): default fast path (clamped to the problem / VMEM budget).
    for tn, tv in ((8, 128), (512, 1024)):
        for holdout in (False, True):
            out = classifier_probe(x, w_emb, b_emb, basis, w_basis, b_basis,
                                   heldout_mask, holdout, tn=tn, tv=tv,
                                   compute_dtype=cdt)
            out = jax.block_until_ready(out)
            assert out.shape == (batch, num_tokens)

            ref = _reference_mixed(x, w_emb, b_emb, basis, w_basis, b_basis,
                                   heldout_mask, holdout, cdt)
            ref32 = _reference_f32(x, w_emb, b_emb, basis, w_basis, b_basis,
                                   heldout_mask, holdout)

            finite = jnp.isfinite(ref)
            assert bool(jnp.all(jnp.isfinite(out) == finite))
            assert bool(jnp.all(jnp.isfinite(ref32) == finite))
            # Tight check vs a reference that mirrors the kernel's precision.
            assert bool(jnp.allclose(jnp.where(finite, out, 0.0),
                                     jnp.where(finite, ref, 0.0),
                                     atol=5e-3, rtol=5e-3))
            # Loose sanity check vs the pure-f32 PyTorch semantics.
            assert bool(jnp.allclose(jnp.where(finite, out, 0.0),
                                     jnp.where(finite, ref32, 0.0),
                                     atol=2e-1, rtol=5e-2))

    print("KERNEL_OK")
</pallas_src>

<mosaic_0001>
module attributes {stable_mosaic.version = 11 : i64} {
  func.func @_latent_x_kernel(%arg0: i32, %arg1: i32, %arg2: memref<8x32xbf16, #tpu.memory_space<vmem>>, %arg3: memref<32x64xbf16, #tpu.memory_space<vmem>>, %arg4: memref<1x64xf32, #tpu.memory_space<vmem>>, %arg5: memref<8x64xbf16, #tpu.memory_space<vmem>>) attributes {dimension_semantics = [#tpu.dimension_semantics<parallel>, #tpu.dimension_semantics<parallel>], iteration_bounds = array<i64: 2, 1>, scalar_prefetch = 0 : i64, scratch_operands = 0 : i64, tpu.core_type = #tpu.core_type<tc>, window_params = [{transform_indices = @transform_0, window_bounds = array<i64: 8, 32>}, {transform_indices = @transform_1, window_bounds = array<i64: 32, 64>}, {transform_indices = @transform_2, window_bounds = array<i64: 1, 64>}, {transform_indices = @transform_3, window_bounds = array<i64: 8, 64>}]} {
    %c0 = arith.constant 0 : index
    %c0_0 = arith.constant 0 : index
    %0 = vector.load %arg2[%c0, %c0_0] : memref<8x32xbf16, #tpu.memory_space<vmem>>, vector<8x32xbf16>
    %c0_1 = arith.constant 0 : index
    %c0_2 = arith.constant 0 : index
    %1 = vector.load %arg3[%c0_1, %c0_2] : memref<32x64xbf16, #tpu.memory_space<vmem>>, vector<32x64xbf16>
    %cst = arith.constant dense<0.000000e+00> : vector<8x64xf32>
    %2 = tpu.matmul %0, %1, %cst {dimension_numbers = #tpu.dot_dimension_numbers<[1], [0], [0], [1], [0, 0, 1, 1], [], []>} : vector<8x32xbf16>, vector<32x64xbf16>, vector<8x64xf32> -> vector<8x64xf32>
    %c0_3 = arith.constant 0 : index
    %c0_4 = arith.constant 0 : index
    %3 = vector.load %arg4[%c0_3, %c0_4] : memref<1x64xf32, #tpu.memory_space<vmem>>, vector<1x64xf32>
    %4 = vector.broadcast %3 : vector<1x64xf32> to vector<8x64xf32>
    %5 = arith.addf %2, %4 : vector<8x64xf32>
    %6 = arith.truncf %5 : vector<8x64xf32> to vector<8x64xbf16>
    %c0_5 = arith.constant 0 : index
    %c0_6 = arith.constant 0 : index
    %7 = vector.load %arg5[%c0_5, %c0_6] : memref<8x64xbf16, #tpu.memory_space<vmem>>, vector<8x64xbf16>
    tpu.vector_store %arg5[%c0_5, %c0_6], %6 {strides = array<i32>} : memref<8x64xbf16, #tpu.memory_space<vmem>>, vector<8x64xbf16>,
    return
  }
  func.func @transform_0(%arg0: i32, %arg1: i32) -> (i32, i32) {
    %c0_i32 = arith.constant 0 : i32
    %c0_i32_0 = arith.constant 0 : i32
    return %arg0, %c0_i32 : i32, i32
  }
  func.func @transform_1(%arg0: i32, %arg1: i32) -> (i32, i32) {
    %c0_i32 = arith.constant 0 : i32
    %c0_i32_0 = arith.constant 0 : i32
    return %c0_i32, %arg1 : i32, i32
  }
  func.func @transform_2(%arg0: i32, %arg1: i32) -> (i32, i32) {
    %c0_i32 = arith.constant 0 : i32
    %c0_i32_0 = arith.constant 0 : i32
    return %c0_i32, %arg1 : i32, i32
  }
  func.func @transform_3(%arg0: i32, %arg1: i32) -> (i32, i32) {
    %c0_i32 = arith.constant 0 : i32
    return %arg0, %arg1 : i32, i32
  }
}

</mosaic_0001>

<llo_original>
// kernel: tpu_custom_call.1
$region0: #{tpu_custom_call.1}
  #allocation0 [shape = 'u32[]', space=smem, size = 0x4, offset = 0x4, fixed_abs, tag = 'smem constant byte address 0x4 - core index']
  #allocation1 [shape = 'u32[144,128]{1,0:T(1,128)}', space=vmem, size = 0x12000, scoped, tag = 'internal scratch']
  %s0 = inlined_call_operand.hbm [shape: bf16[10,32], index: 0, kind: input, shape index: {}]
  %s1 = inlined_call_operand.hbm [shape: bf16[32,64], index: 1, kind: input, shape index: {}]
  %s2 = inlined_call_operand.vmem [shape: f32[1,64], index: 2, kind: input, shape index: {}]
  %s3 = inlined_call_operand.hbm [shape: bf16[10,64], index: 3, kind: output, shape index: {}]
  %s4 = sld [smem:[#allocation0]]
  $region53: #{tpu_custom_call.1} parent=0
    _
  %s6 = ssub.s32 1, %s4
  %s7 = scalar_select 0, %s6, %s4
  $region1: #{tpu_custom_call.1} parent=0
    #allocation2 [shape = 'u8[4096]{0}', space=vmem, size = 0x1000, scoped, tag = 'input window, operand 0']
    #allocation3 [shape = 's32[2]{0}', space=sflag, size = 0x8, scoped, tag = 'scoped memory for tpu_custom_call.1']
    #allocation4 [shape = 's32[2]{0}', space=sflag, size = 0x8, scoped, tag = 'scoped memory for tpu_custom_call.1']
    #allocation5 [shape = 'u8[8192]{0}', space=vmem, size = 0x2000, scoped, tag = 'input window, operand 1, single buffered']
    #allocation6 [shape = 's32[1]{0}', space=sflag, size = 0x4, scoped, tag = 'scoped memory for tpu_custom_call.1']
    #allocation7 [shape = 'u8[4096]{0}', space=vmem, size = 0x1000, scoped, tag = 'output window, operand 0']
    %8 = vsyncpa [#allocation3], 0
    %s9 = scalar_lea.sflag [#allocation3], 1
    %10 = vsyncpa %s9, 0
    %11 = vsyncpa [#allocation6], 0
    %12 = vsyncpa [#allocation4], 0
    %s13 = scalar_lea.sflag [#allocation4], 1
    %14 = vsyncpa %s13, 0
    loop: start=0, step=1, limit=4
    $region2: #{tpu_custom_call.1} parent=1 // loop_pre_header
      _
    $region3: #{tpu_custom_call.1} parent=1 // loop_header
      %s16 = sphi 0, %s20
      %p17 = scmp.ge.s32.totalorder %s16, 4
      %s23 = sphi 0, %s35
      %s24 = sphi 0, %s31
      %s25 = sphi 0, %s23
      %s26 = sphi 0, %s24
      %s27 = sphi 0, %s25
      %s28 = sphi 0, %s26
      %s38 = sphi 0, %s40
      %s41 = sphi 0, %s38
      %s42 = sphi 0, %s41
      %s58 = sphi 0, %s42
      %s64 = sphi 0, %s66
      %s67 = sphi 0, %s64
      %s68 = sphi 0, %s67
      %s84 = sphi 0, %s68
      %s90 = sphi 0, %s92
      %s93 = sphi 0, %s90
      %s94 = sphi 0, %s93
      %s110 = sphi 0, %s94
      %s118 = sphi 0, %s120
      %s121 = sphi 0, %s118
      %s122 = sphi 0, %s121
      %s138 = sphi 0, %s122
    $region4: #{tpu_custom_call.1} parent=1 // loop_header_branch
      %19 = sbr.rel (%p17) target = $region8
    $region5: #{tpu_custom_call.1} parent=1 // loop_body
      %s21 = ssub.s32 %s16, 1
      %s22 = ssub.s32 %s16, 2
      %s29 = sadd.s32 1, %s24
      %p30 = scmp.ge.s32.totalorder %s29, 1
      %s31 = scalar_select %p30, 0, %s29
      %s32 = sadd.s32 1, %s23
      %s33 = scalar_select %p30, %s32, %s23
      %p34 = scmp.ge.s32.totalorder %s33, 2
      %s35 = scalar_select %p34, 0, %s33
      %s36 = ssub.s32 %s23, %s35
      %p37 = scmp.eq.s32.totalorder %s36, 0
      %s39 = sadd.s32 %s38, 1
      %s40 = scalar_select %p37, %s38, %s39
      %p43 = pneg %p37
      %p44 = scmp.eq.s32.totalorder %s16, 1
      %p45 = por %p43, %p44
      %p46 = scmp.ne.s32.totalorder %s38, %s41
      %p47 = scmp.eq.s32.totalorder %s16, 0
      %p48 = por %p46, %p47
      %p49 = scmp.ne.s32.totalorder %s38, %s41
      %p50 = scmp.eq.s32.totalorder %s21, 1
      %p51 = por %p49, %p50
      %p52 = scmp.ne.s32.totalorder %s41, %s42
      %p53 = scmp.eq.s32.totalorder %s21, 0
      %p54 = por %p52, %p53
      %p55 = scmp.ne.s32.totalorder %s41, %s42
      %p56 = scmp.eq.s32.totalorder %s22, 1
      %p57 = por %p55, %p56
      %p59 = scmp.ne.s32.totalorder %s42, %s58
      %p60 = scmp.eq.s32.totalorder %s22, 0
      %p61 = por %p59, %p60
      %s62 = ssub.s32 %s24, %s31
      %p63 = scmp.eq.s32.totalorder %s62, 0
      %s65 = sadd.s32 %s64, 1
      %s66 = scalar_select %p63, %s64, %s65
      %p69 = pneg %p63
      %p70 = scmp.eq.s32.totalorder %s16, 1
      %p71 = por %p69, %p70
      %p72 = scmp.ne.s32.totalorder %s64, %s67
      %p73 = scmp.eq.s32.totalorder %s16, 0
      %p74 = por %p72, %p73
      %p75 = scmp.ne.s32.totalorder %s64, %s67
      %p76 = scmp.eq.s32.totalorder %s21, 1
      %p77 = por %p75, %p76
      %p78 = scmp.ne.s32.totalorder %s67, %s68
      %p79 = scmp.eq.s32.totalorder %s21, 0
      %p80 = por %p78, %p79
      %p81 = scmp.ne.s32.totalorder %s67, %s68
      %p82 = scmp.eq.s32.totalorder %s22, 1
      %p83 = por %p81, %p82
      %p85 = scmp.ne.s32.totalorder %s68, %s84
      %p86 = scmp.eq.s32.totalorder %s22, 0
      %p87 = por %p85, %p86
      %s88 = ssub.s32 %s24, %s31
      %p89 = scmp.eq.s32.totalorder %s88, 0
      %s91 = sadd.s32 %s90, 1
      %s92 = scalar_select %p89, %s90, %s91
      %p95 = pneg %p89
      %p96 = scmp.eq.s32.totalorder %s16, 1
      %p97 = por %p95, %p96
      %p98 = scmp.ne.s32.totalorder %s90, %s93
      %p99 = scmp.eq.s32.totalorder %s16, 0
      %p100 = por %p98, %p99
      %p101 = scmp.ne.s32.totalorder %s90, %s93
      %p102 = scmp.eq.s32.totalorder %s21, 1
      %p103 = por %p101, %p102
      %p104 = scmp.ne.s32.totalorder %s93, %s94
      %p105 = scmp.eq.s32.totalorder %s21, 0
      %p106 = por %p104, %p105
      %p107 = scmp.ne.s32.totalorder %s93, %s94
      %p108 = scmp.eq.s32.totalorder %s22, 1
      %p109 = por %p107, %p108
      %p111 = scmp.ne.s32.totalorder %s94, %s110
      %p112 = scmp.eq.s32.totalorder %s22, 0
      %p113 = por %p111, %p112
      %s114 = ssub.s32 %s23, %s35
      %s115 = ssub.s32 %s24, %s31
      %s116 = sor.u32 %s114, %s115
      %p117 = scmp.eq.s32.totalorder %s116, 0
      %s119 = sadd.s32 %s118, 1
      %s120 = scalar_select %p117, %s118, %s119
      %p123 = pneg %p117
      %p124 = scmp.eq.s32.totalorder %s16, 1
      %p125 = por %p123, %p124
      %p126 = scmp.ne.s32.totalorder %s118, %s121
      %p127 = scmp.eq.s32.totalorder %s16, 0
      %p128 = por %p126, %p127
      %p129 = scmp.ne.s32.totalorder %s118, %s121
      %p130 = scmp.eq.s32.totalorder %s21, 1
      %p131 = por %p129, %p130
      %p132 = scmp.ne.s32.totalorder %s121, %s122
      %p133 = scmp.eq.s32.totalorder %s21, 0
      %p134 = por %p132, %p133
      %p135 = scmp.ne.s32.totalorder %s121, %s122
      %p136 = scmp.eq.s32.totalorder %s22, 1
      %p137 = por %p135, %p136
      %p139 = scmp.ne.s32.totalorder %s122, %s138
      %p140 = scmp.eq.s32.totalorder %s22, 0
      %p141 = por %p139, %p140
      %p142 = scmp.le.s32.totalorder 1, %s16
      %p143 = scmp.lt.s32.totalorder %s16, 3
      %p144 = pnand %p142, %p143
      %p145 = pneg %p144
      // Predicated region
      $region9: #{tpu_custom_call.1} parent=5 // pred_check
        _
      $region10: #{tpu_custom_call.1} parent=5 // pred_check_branch
        %147 = sbr.rel (%p144) target = $region12
      $region11: #{tpu_custom_call.1} parent=5 // pred_region
        %s148 = ssub.s32 %s16, 1
        // Predicated region
        $region13: #{tpu_custom_call.1} parent=11 // pred_check
          %p149 = pneg %p80
        $region14: #{tpu_custom_call.1} parent=11 // pred_check_branch
          %151 = sbr.rel (%p149) target = $region16
        $region15: #{tpu_custom_call.1} parent=11 // pred_region
          %s153 = ssub.s32 256, 256
          %154 = vsyncadd [#allocation6], %s153
          %s155 = smul.addr %s26, 64
          %s156 = scalar_lea.hbm %s1, %s155
          %s157 = sshll.u32 [#allocation5], 4
          %s158 = int_to_ptr.vmem [resolvable:$true] %s157
          %163 = dma.hbm_to_vmem [thread:$0]  %s156, 256, %s158, [#allocation6], 64, 64, 4
        $region16: #{tpu_custom_call.1} parent=11 // pred_fallthru
          _
        // Predicated region
        $region17: #{tpu_custom_call.1} parent=11 // pred_check
          %p164 = pneg %p106
        $region18: #{tpu_custom_call.1} parent=11 // pred_check_branch
          %166 = sbr.rel (%p164) target = $region20
        $region19: #{tpu_custom_call.1} parent=11 // pred_region
          %p167 = scmp.lt.s32.totalorder %s26, 0
          %s168 = scalar_select %p167, %s26, 0
          %s169 = scalar_lea.vmem %s2, %s168
        $region20: #{tpu_custom_call.1} parent=11 // pred_fallthru
          _
      $region12: #{tpu_custom_call.1} parent=5 // pred_fallthru
        _
      %p170 = scmp.lt.s32.totalorder %s16, 2
      // Predicated region
      $region21: #{tpu_custom_call.1} parent=5 // pred_check
        %p171 = pneg %p170
      $region22: #{tpu_custom_call.1} parent=5 // pred_check_branch
        %173 = sbr.rel (%p171) target = $region24
      $region23: #{tpu_custom_call.1} parent=5 // pred_region
        // Predicated region
        $region25: #{tpu_custom_call.1} parent=23 // pred_check
          %p174 = pneg %p48
        $region26: #{tpu_custom_call.1} parent=23 // pred_check_branch
          %176 = sbr.rel (%p174) target = $region28
        $region27: #{tpu_custom_call.1} parent=23 // pred_region
          %s177 = sand.u32 %s38, 1
          %s178 = scalar_lea.sflag [#allocation3], %s177
          %s179 = sand.u32 %s38, 1
          %s180 = smul.addr %s179, 4
          %s181 = scalar_lea.vmem [#allocation2], %s180
          %s183 = ssub.s32 64, 64
          %184 = vsyncadd %s178, %s183
          %s185 = smul.addr %s23, 64
          %s186 = scalar_lea.hbm %s0, %s185
          %s188 = sshll.u32 %s181, 4
          %s189 = int_to_ptr.vmem [resolvable:$true] %s188
          %191 = dma.hbm_to_vmem [thread:$0]  %s186, 64, %s189, %s178
        $region28: #{tpu_custom_call.1} parent=23 // pred_fallthru
          _
      $region24: #{tpu_custom_call.1} parent=5 // pred_fallthru
        _
      %p192 = scmp.le.s32.totalorder 1, %s16
      %p193 = scmp.lt.s32.totalorder %s16, 3
      %p194 = pnand %p192, %p193
      %p195 = pneg %p194
      // Predicated region
      $region29: #{tpu_custom_call.1} parent=5 // pred_check
        _
      $region30: #{tpu_custom_call.1} parent=5 // pred_check_branch
        %197 = sbr.rel (%p194) target = $region32
      $region31: #{tpu_custom_call.1} parent=5 // pred_region
        %s198 = ssub.s32 %s16, 1
        %s199 = sand.u32 %s41, 1
        %s200 = scalar_lea.sflag [#allocation3], %s199
        %s201 = sand.u32 %s41, 1
        %s202 = smul.addr %s201, 4
        %s203 = scalar_lea.vmem [#allocation2], %s202
        // Predicated region
        $region33: #{tpu_custom_call.1} parent=31 // pred_check
          %p204 = pneg %p54
        $region34: #{tpu_custom_call.1} parent=31 // pred_check_branch
          %206 = sbr.rel (%p204) target = $region36
        $region35: #{tpu_custom_call.1} parent=31 // pred_region
          %207 = dma.done %s200, 64
        $region36: #{tpu_custom_call.1} parent=31 // pred_fallthru
          _
        // Predicated region
        $region37: #{tpu_custom_call.1} parent=31 // pred_check
          %p208 = pneg %p80
        $region38: #{tpu_custom_call.1} parent=31 // pred_check_branch
          %210 = sbr.rel (%p208) target = $region40
        $region39: #{tpu_custom_call.1} parent=31 // pred_region
          %211 = dma.done [#allocation6], 256
        $region40: #{tpu_custom_call.1} parent=31 // pred_fallthru
          _
        %s212 = sand.u32 %s41, 1
        %s213 = scalar_lea.sflag [#allocation3], %s212
        %s214 = sand.u32 %s41, 1
        %s215 = smul.addr %s214, 4
        %s216 = scalar_lea.vmem [#allocation2], %s215
        %p217 = pneg %p54
        %p218 = pneg %p51
        %p219 = pneg %p80
        %p220 = pneg %p77
        %p221 = scmp.lt.s32.totalorder %s26, 0
        %s222 = scalar_select %p221, %s26, 0
        %s223 = scalar_lea.vmem %s2, %s222
        %p224 = pneg %p106
        %p225 = pneg %p103
        %p226 = pneg %p134
        %p227 = pneg %p131
        %s228 = sand.u32 %s121, 1
        %s229 = scalar_lea.sflag [#allocation4], %s228
        %s230 = sand.u32 %s121, 1
        %s231 = smul.addr %s230, 4
        %s232 = scalar_lea.vmem [#allocation7], %s231
        %p233 = scmp.lt.s32.totalorder %s26, 0
        %s234 = scalar_select %p233, %s26, 0
        %s235 = scalar_lea.vmem %s2, %s234
        %v237 = vld [vmem:[%s203] sm:$0xf]
        %v238 = vld [vmem:[#allocation5] sm:$0xf]
        %v239 = vld [vmem:[#allocation5 + $0x4] sm:$0xf]
        %v240 = vld [vmem:[#allocation5 + $0x8] sm:$0xf]
        %v241 = vld [vmem:[#allocation5 + $0xc] sm:$0xf]
        %v242 = vld [vmem:[%s235] sm:$0x1]
        %v244 = vlaneseq
        %v245 = vshrl.u32 %v244, 7
        %v246 = vsub.s32 0, %v245
        %v247 = vrot.slane %v242, %v246
        %v253 = vunpack.c.l.b16 %v238
        %v254 = vunpack.c.l.b16 %v239
        %v255 = vunpack.c.l.b16 %v240
        %v256 = vunpack.c.l.b16 %v241
        %v257 = vpack.c.b16 %v254, %v253
        %v258 = vpack.c.b16 %v256, %v255
        %vm261 = vcmask 261120
        %v263 = vsel %vm261, %v237, 0
        %265 = vmatprep.subr.bf16.mxu0 0
        %266 = vmatpush1.bf16.msra.mxu0 %v257
        %267 = vmatprep.subr.bf16.mxu0 0
        %268 = vmatpush1.bf16.msra.mxu0 %v258
        %269 = vmatprep.subr.bf16.mxu0 0
        %270 = vmatpush1.bf16.msra.mxu0 0
        %271 = vmatprep.subr.bf16.mxu0 0
        %272 = vmatpush1.bf16.msra.mxu0 0
        %273 = vmatprep.subr.bf16.mxu0 0
        %274 = vmatpush1.bf16.msra.mxu0 0
        %275 = vmatprep.subr.bf16.mxu0 0
        %276 = vmatpush1.bf16.msra.mxu0 0
        %277 = vmatprep.subr.bf16.mxu0 0
        %278 = vmatpush1.bf16.msra.mxu0 0
        %279 = vmatprep.subr.bf16.mxu0 0
        %280 = vmatpush1.bf16.msra.mxu0 0
        %281 = vmatprep.subr.bf16.mxu0 0
        %282 = vmatpush1.bf16.msra.mxu0 0
        %283 = vmatprep.subr.bf16.mxu0 0
        %284 = vmatpush1.bf16.msra.mxu0 0
        %285 = vmatprep.subr.bf16.mxu0 0
        %286 = vmatpush1.bf16.msra.mxu0 0
        %287 = vmatprep.subr.bf16.mxu0 0
        %288 = vmatpush1.bf16.msra.mxu0 0
        %289 = vmatprep.subr.bf16.mxu0 0
        %290 = vmatpush1.bf16.msra.mxu0 0
        %291 = vmatprep.subr.bf16.mxu0 0
        %292 = vmatpush1.bf16.msra.mxu0 0
        %293 = vmatprep.subr.bf16.mxu0 0
        %294 = vmatpush1.bf16.msra.mxu0 0
        %295 = vmatprep.subr.bf16.mxu0 0
        %296 = vmatpush1.bf16.msra.mxu0 0
        %297 = vmatprep.mubr.bf16.mxu0 0
        %298 = vmatmul.mubr.bf16.gmra.mrb[0].mxu0 %v263
        %v299 = vpop.f32.mrb[0].mxu0
        %v300 = vadd.f32 %v247, %v299
        %v301 = vpop.f32.mrb[0].mxu0
        %v302 = vpop.f32.mrb[0].mxu0
        %v303 = vpop.f32.mrb[0].mxu0
        %304 = vdwg.mxu0
        %v305 = vpack.c.bf16 %v300, %v300
        %vm306 = vcmask 519168
        %307 = vst.msk [vmem:[%s232] sm:$0xf] %vm306, %v305
        %s308 = sand.u32 %s121, 1
        %s309 = scalar_lea.sflag [#allocation4], %s308
        %s310 = sand.u32 %s121, 1
        %s311 = smul.addr %s310, 4
        %s312 = scalar_lea.vmem [#allocation7], %s311
        // Predicated region
        $region41: #{tpu_custom_call.1} parent=31 // pred_check
          %p313 = pneg %p131
        $region42: #{tpu_custom_call.1} parent=31 // pred_check_branch
          %315 = sbr.rel (%p313) target = $region44
        $region43: #{tpu_custom_call.1} parent=31 // pred_region
          %s317 = ssub.s32 64, 64
          %318 = vsyncadd %s309, %s317
          %s319 = sadd.s32 %s26, %s25
          %s320 = smul.addr %s319, 64
          %s321 = scalar_lea.hbm %s3, %s320
          %s323 = sshll.u32 %s312, 4
          %s324 = int_to_ptr.vmem [resolvable:$true] %s323
          %326 = dma.vmem_to_hbm [thread:$0]  %s324, 64, %s321, %s309
        $region44: #{tpu_custom_call.1} parent=31 // pred_fallthru
          _
      $region32: #{tpu_custom_call.1} parent=5 // pred_fallthru
        _
      %p327 = scmp.le.s32.totalorder 2, %s16
      // Predicated region
      $region45: #{tpu_custom_call.1} parent=5 // pred_check
        %p328 = pneg %p327
      $region46: #{tpu_custom_call.1} parent=5 // pred_check_branch
        %330 = sbr.rel (%p328) target = $region48
      $region47: #{tpu_custom_call.1} parent=5 // pred_region
        %s331 = ssub.s32 %s16, 2
        // Predicated region
        $region49: #{tpu_custom_call.1} parent=47 // pred_check
          %p332 = pneg %p137
        $region50: #{tpu_custom_call.1} parent=47 // pred_check_branch
          %334 = sbr.rel (%p332) target = $region52
        $region51: #{tpu_custom_call.1} parent=47 // pred_region
          %s335 = sand.u32 %s122, 1
          %s336 = scalar_lea.sflag [#allocation4], %s335
          %s337 = sand.u32 %s122, 1
          %s338 = smul.addr %s337, 4
          %s339 = scalar_lea.vmem [#allocation7], %s338
          %340 = dma.done %s336, 64
        $region52: #{tpu_custom_call.1} parent=47 // pred_fallthru
          _
      $region48: #{tpu_custom_call.1} parent=5 // pred_fallthru
        _
    $region6: #{tpu_custom_call.1} parent=1 // loop_footer
      %s20 = sadd.s32 1, %s16
    $region7: #{tpu_custom_call.1} parent=1 // loop_footer_branch
      %15 = sbr.rel target = $region3
    $region8: #{tpu_custom_call.1} parent=1 // loop_exit
      _
    %341 = vsyncpa [#allocation3], 1
    %s342 = scalar_lea.sflag [#allocation3], 1
    %343 = vsyncpa %s342, 1
    %344 = vsyncpa [#allocation6], 1
    %345 = vsyncpa [#allocation4], 1
    %s346 = scalar_lea.sflag [#allocation4], 1
    %347 = vsyncpa %s346, 1

</llo_original>
